<compile_context>
chip_gen: v7x
topology: tpu7x:2x2x1
jax: 0.10.0
libtpu: 0.0.40
codegen_flags: <defaults>
</compile_context>

<pallas_src>
import math
from functools import partial

import jax
import jax.numpy as jnp
from jax.experimental import pallas as pl
from jax.experimental.pallas import tpu as pltpu

_KEEP_P = 0.1  # F.dropout(x, 0.9): keep prob 0.1, scale kept values by 1/0.1


def _round_up(x, m):
    return (x + m - 1) // m * m


# --------------------------------------------------------------- pass 1 kernel
def _linear_kernel(seq_ref, w_ref, fcb_ref, o_ref):
    # seq tile (TM, K_pad) @ W (K_pad, F_pad) + fc_bias -> bf16 seq_fts tile
    acc = jnp.dot(seq_ref[...], w_ref[...], preferred_element_type=jnp.float32)
    o_ref[...] = (acc + fcb_ref[...]).astype(o_ref.dtype)


# --------------------------------------------------------------- pass 2 kernel
def _prop_kernel(slope_ref, adj_ref, sf_ref, bias_ref, u_ref, o_ref, acc_ref):
    k = pl.program_id(1)

    @pl.when(k == 0)
    def _():
        acc_ref[...] = jnp.zeros_like(acc_ref)

    # adj tile (TM, TK) bf16 @ seq_fts tile (TK, F_pad) bf16, f32 accumulate
    acc_ref[...] += jnp.dot(adj_ref[...], sf_ref[...],
                            preferred_element_type=jnp.float32)

    @pl.when(k == pl.num_programs(1) - 1)
    def _():
        out = acc_ref[...] + bias_ref[...]                       # GCN bias
        keep = u_ref[...] < _KEEP_P                              # dropout p=0.9
        out = jnp.where(keep, out * (1.0 / _KEEP_P), jnp.zeros_like(out))
        slope = slope_ref[0]                                     # PReLU
        o_ref[...] = jnp.where(out > 0.0, out, slope * out)


# ------------------------------------------------------------------- wrapper
@partial(jax.jit, static_argnames=("tile_n",))
def gcn_forward(seq, adj, w, fc_bias, gcn_bias, prelu_a, dropout_u, tile_n=512):
    """seq: (N, in_ft) f32, adj: (N, N) f32, w: (out_ft, in_ft) f32 (torch layout),
    fc_bias/gcn_bias: (out_ft,) f32, prelu_a: (1,) f32, dropout_u: (N, out_ft) f32
    uniform(0,1) samples used for the dropout mask."""
    f32 = jnp.float32
    n, in_ft = seq.shape
    out_ft = w.shape[0]

    f_pad = _round_up(out_ft, 128)                # lane-dense feature dim
    k_pad = _round_up(in_ft, 128)
    tile = min(tile_n, _round_up(n, 128))         # row/col tile of adj
    n_pad = _round_up(n, tile)

    # Zero-pad everything (zeros keep the math exact; padded rows/cols sliced off).
    seq_p = jnp.zeros((n_pad, k_pad), f32).at[:n, :in_ft].set(seq.astype(f32))
    w_t_p = jnp.zeros((k_pad, f_pad), f32).at[:in_ft, :out_ft].set(w.T.astype(f32))
    fcb_p = jnp.zeros((1, f_pad), f32).at[0, :out_ft].set(fc_bias.astype(f32))
    bias_p = jnp.zeros((1, f_pad), f32).at[0, :out_ft].set(gcn_bias.astype(f32))
    adj_p = jnp.zeros((n_pad, n_pad), jnp.bfloat16).at[:n, :n].set(
        adj.astype(jnp.bfloat16))
    # Pad dropout uniforms with 1.0 (>= keep prob) - padded outputs are dropped anyway.
    u_p = jnp.ones((n_pad, f_pad), f32).at[:n, :out_ft].set(dropout_u.astype(f32))

    # ---- pass 1: seq @ W.T + fc_bias, computed once, bf16 output ----
    # TODO(synk): if in_ft ever gets very large, add a k-loop over in_ft here too.
    seq_fts = pl.pallas_call(
        _linear_kernel,
        out_shape=jax.ShapeDtypeStruct((n_pad, f_pad), jnp.bfloat16),
        grid=(n_pad // tile,),
        in_specs=[
            pl.BlockSpec((tile, k_pad), lambda i: (i, 0)),   # seq rows
            pl.BlockSpec((k_pad, f_pad), lambda i: (0, 0)),  # W^T (whole)
            pl.BlockSpec((1, f_pad), lambda i: (0, 0)),      # fc bias
        ],
        out_specs=pl.BlockSpec((tile, f_pad), lambda i: (i, 0)),
        compiler_params=pltpu.CompilerParams(
            dimension_semantics=("parallel",)),
    )(seq_p, w_t_p, fcb_p)

    # ---- pass 2: adj @ seq_fts (+bias, dropout, PReLU fused epilogue) ----
    out_p = pl.pallas_call(
        _prop_kernel,
        out_shape=jax.ShapeDtypeStruct((n_pad, f_pad), f32),
        grid=(n_pad // tile, n_pad // tile),
        in_specs=[
            pl.BlockSpec(memory_space=pltpu.MemorySpace.SMEM),    # prelu slope (1,)
            pl.BlockSpec((tile, tile), lambda i, k: (i, k)),      # adj tile (bf16)
            pl.BlockSpec((tile, f_pad), lambda i, k: (k, 0)),     # seq_fts tile (bf16)
            pl.BlockSpec((1, f_pad), lambda i, k: (0, 0)),        # gcn bias
            pl.BlockSpec((tile, f_pad), lambda i, k: (i, 0)),     # dropout uniforms
        ],
        out_specs=pl.BlockSpec((tile, f_pad), lambda i, k: (i, 0)),
        scratch_shapes=[pltpu.VMEM((tile, f_pad), f32)],          # f32 accumulator
        compiler_params=pltpu.CompilerParams(
            dimension_semantics=("parallel", "arbitrary")),
    )(prelu_a, adj_p, seq_fts, bias_p, u_p)

    return out_p[:n, :out_ft]


if __name__ == "__main__":
    # Small shapes consistent with GCN(in_ft, out_ft) on an N-node graph.
    N, IN_FT, OUT_FT = 16, 32, 32

    key = jax.random.PRNGKey(0)
    k_seq, k_adj, k_w, k_drop = jax.random.split(key, 4)

    # Inputs
    seq = jax.random.normal(k_seq, (N, IN_FT), dtype=jnp.float32)
    adj_raw = jax.random.uniform(k_adj, (N, N), dtype=jnp.float32)
    adj = (adj_raw > 0.7).astype(jnp.float32)               # sparse-ish adjacency
    adj = adj / jnp.maximum(adj.sum(axis=1, keepdims=True), 1.0)

    # Parameters (deterministic init mirroring __init__):
    #   nn.Linear weight: xavier_normal_(gain=1.414) -> std = gain*sqrt(2/(fi+fo))
    std = 1.414 * math.sqrt(2.0 / (IN_FT + OUT_FT))
    w = jax.random.normal(k_w, (OUT_FT, IN_FT), dtype=jnp.float32) * std
    fc_bias = jnp.zeros((OUT_FT,), dtype=jnp.float32)          # m.bias.fill_(0.0)
    gcn_bias = jnp.full((OUT_FT,), 0.001, dtype=jnp.float32)   # self.bias.fill_(0.001)
    prelu_a = jnp.array([0.25], dtype=jnp.float32)             # nn.PReLU default
    dropout_u = jax.random.uniform(k_drop, (N, OUT_FT), dtype=jnp.float32)

    out = gcn_forward(seq, adj, w, fc_bias, gcn_bias, prelu_a, dropout_u)
    jax.block_until_ready(out)

    assert out.shape == (N, OUT_FT) and out.dtype == jnp.float32

    # Pure-JAX reference with the same dropout mask (bf16 adj path -> loose tol).
    seq_fts_ref = seq @ w.T + fc_bias
    ref = adj @ seq_fts_ref + gcn_bias
    ref = jnp.where(dropout_u < _KEEP_P, ref * (1.0 / _KEEP_P), 0.0)
    ref = jnp.where(ref > 0.0, ref, 0.25 * ref)
    max_err = float(jnp.max(jnp.abs(out - ref)))
    scale = float(jnp.max(jnp.abs(ref))) + 1e-6
    assert max_err <= 0.05 * scale + 1e-3, (max_err, scale)

    print("KERNEL_OK")
</pallas_src>

<mosaic_0001>
module attributes {stable_mosaic.version = 11 : i64} {
  func.func @_linear_kernel(%arg0: i32, %arg1: memref<128x128xf32, #tpu.memory_space<vmem>>, %arg2: memref<128x128xf32, #tpu.memory_space<vmem>>, %arg3: memref<1x128xf32, #tpu.memory_space<vmem>>, %arg4: memref<128x128xbf16, #tpu.memory_space<vmem>>) attributes {dimension_semantics = [#tpu.dimension_semantics<parallel>], iteration_bounds = array<i64: 1>, scalar_prefetch = 0 : i64, scratch_operands = 0 : i64, tpu.core_type = #tpu.core_type<tc>, window_params = [{transform_indices = @transform_0, window_bounds = array<i64: 128, 128>}, {pipeline_mode = #tpu.pipeline_mode<synchronous>, transform_indices = @transform_1, window_bounds = array<i64: 128, 128>}, {pipeline_mode = #tpu.pipeline_mode<synchronous>, transform_indices = @transform_2, window_bounds = array<i64: 1, 128>}, {transform_indices = @transform_3, window_bounds = array<i64: 128, 128>}]} {
    %c0 = arith.constant 0 : index
    %c0_0 = arith.constant 0 : index
    %0 = vector.load %arg1[%c0, %c0_0] : memref<128x128xf32, #tpu.memory_space<vmem>>, vector<128x128xf32>
    %c0_1 = arith.constant 0 : index
    %c0_2 = arith.constant 0 : index
    %1 = vector.load %arg2[%c0_1, %c0_2] : memref<128x128xf32, #tpu.memory_space<vmem>>, vector<128x128xf32>
    %cst = arith.constant dense<0.000000e+00> : vector<128x128xf32>
    %2 = tpu.matmul %0, %1, %cst {dimension_numbers = #tpu.dot_dimension_numbers<[1], [0], [0], [1], [0, 0, 1, 1], [], []>} : vector<128x128xf32>, vector<128x128xf32>, vector<128x128xf32> -> vector<128x128xf32>
    %c0_3 = arith.constant 0 : index
    %c0_4 = arith.constant 0 : index
    %3 = vector.load %arg3[%c0_3, %c0_4] : memref<1x128xf32, #tpu.memory_space<vmem>>, vector<1x128xf32>
    %4 = vector.broadcast %3 : vector<1x128xf32> to vector<128x128xf32>
    %5 = arith.addf %2, %4 : vector<128x128xf32>
    %6 = arith.truncf %5 : vector<128x128xf32> to vector<128x128xbf16>
    %c0_5 = arith.constant 0 : index
    %c0_6 = arith.constant 0 : index
    %7 = vector.load %arg4[%c0_5, %c0_6] : memref<128x128xbf16, #tpu.memory_space<vmem>>, vector<128x128xbf16>
    tpu.vector_store %arg4[%c0_5, %c0_6], %6 {strides = array<i32>} : memref<128x128xbf16, #tpu.memory_space<vmem>>, vector<128x128xbf16>,
    return
  }
  func.func @transform_0(%arg0: i32) -> (i32, i32) {
    %c0_i32 = arith.constant 0 : i32
    %c0_i32_0 = arith.constant 0 : i32
    return %arg0, %c0_i32 : i32, i32
  }
  func.func @transform_1(%arg0: i32) -> (i32, i32) {
    %c0_i32 = arith.constant 0 : i32
    %c0_i32_0 = arith.constant 0 : i32
    %c0_i32_1 = arith.constant 0 : i32
    return %c0_i32, %c0_i32_0 : i32, i32
  }
  func.func @transform_2(%arg0: i32) -> (i32, i32) {
    %c0_i32 = arith.constant 0 : i32
    %c0_i32_0 = arith.constant 0 : i32
    %c0_i32_1 = arith.constant 0 : i32
    return %c0_i32, %c0_i32_0 : i32, i32
  }
  func.func @transform_3(%arg0: i32) -> (i32, i32) {
    %c0_i32 = arith.constant 0 : i32
    %c0_i32_0 = arith.constant 0 : i32
    return %arg0, %c0_i32 : i32, i32
  }
}

module attributes {stable_mosaic.version = 11 : i64} {
  func.func @_prop_kernel(%arg0: i32, %arg1: i32, %arg2: memref<1xf32, #tpu.memory_space<smem>>, %arg3: memref<128x128xbf16, #tpu.memory_space<vmem>>, %arg4: memref<128x128xbf16, #tpu.memory_space<vmem>>, %arg5: memref<1x128xf32, #tpu.memory_space<vmem>>, %arg6: memref<128x128xf32, #tpu.memory_space<vmem>>, %arg7: memref<128x128xf32, #tpu.memory_space<vmem>>, %arg8: memref<128x128xf32, #tpu.memory_space<vmem>>) attributes {dimension_semantics = [#tpu.dimension_semantics<parallel>, #tpu.dimension_semantics<arbitrary>], iteration_bounds = array<i64: 1, 1>, scalar_prefetch = 0 : i64, scratch_operands = 1 : i64, tpu.core_type = #tpu.core_type<tc>, window_params = [{transform_indices = @transform_0, window_bounds = array<i64: 1>}, {transform_indices = @transform_1, window_bounds = array<i64: 128, 128>}, {transform_indices = @transform_2, window_bounds = array<i64: 128, 128>}, {pipeline_mode = #tpu.pipeline_mode<synchronous>, transform_indices = @transform_3, window_bounds = array<i64: 1, 128>}, {transform_indices = @transform_4, window_bounds = array<i64: 128, 128>}, {transform_indices = @transform_5, window_bounds = array<i64: 128, 128>}]} {
    %c0_i32 = arith.constant 0 : i32
    %0 = arith.cmpi eq, %arg1, %c0_i32 : i32
    %1 = arith.extui %0 : i1 to i32
    %c0_i32_0 = arith.constant 0 : i32
    %2 = arith.cmpi ne, %1, %c0_i32_0 : i32
    scf.if %2 {
      %cst_10 = arith.constant 0.000000e+00 : f32
      %12 = vector.broadcast %cst_10 : f32 to vector<128x128xf32>
      %c0_11 = arith.constant 0 : index
      %c0_12 = arith.constant 0 : index
      %13 = vector.load %arg8[%c0_11, %c0_12] : memref<128x128xf32, #tpu.memory_space<vmem>>, vector<128x128xf32>
      tpu.vector_store %arg8[%c0_11, %c0_12], %12 {strides = array<i32>} : memref<128x128xf32, #tpu.memory_space<vmem>>, vector<128x128xf32>,
    } else {
    }
    %c0 = arith.constant 0 : index
    %c0_1 = arith.constant 0 : index
    %3 = vector.load %arg8[%c0, %c0_1] : memref<128x128xf32, #tpu.memory_space<vmem>>, vector<128x128xf32>
    %c0_2 = arith.constant 0 : index
    %c0_3 = arith.constant 0 : index
    %4 = vector.load %arg3[%c0_2, %c0_3] : memref<128x128xbf16, #tpu.memory_space<vmem>>, vector<128x128xbf16>
    %c0_4 = arith.constant 0 : index
    %c0_5 = arith.constant 0 : index
    %5 = vector.load %arg4[%c0_4, %c0_5] : memref<128x128xbf16, #tpu.memory_space<vmem>>, vector<128x128xbf16>
    %cst = arith.constant dense<0.000000e+00> : vector<128x128xf32>
    %6 = tpu.matmul %4, %5, %cst {dimension_numbers = #tpu.dot_dimension_numbers<[1], [0], [0], [1], [0, 0, 1, 1], [], []>} : vector<128x128xbf16>, vector<128x128xbf16>, vector<128x128xf32> -> vector<128x128xf32>
    %7 = arith.addf %3, %6 : vector<128x128xf32>
    %c0_6 = arith.constant 0 : index
    %c0_7 = arith.constant 0 : index
    %8 = vector.load %arg8[%c0_6, %c0_7] : memref<128x128xf32, #tpu.memory_space<vmem>>, vector<128x128xf32>
    tpu.vector_store %arg8[%c0_6, %c0_7], %7 {strides = array<i32>} : memref<128x128xf32, #tpu.memory_space<vmem>>, vector<128x128xf32>,
    %c0_i32_8 = arith.constant 0 : i32
    %9 = arith.cmpi eq, %arg1, %c0_i32_8 : i32
    %10 = arith.extui %9 : i1 to i32
    %c0_i32_9 = arith.constant 0 : i32
    %11 = arith.cmpi ne, %10, %c0_i32_9 : i32
    scf.if %11 {
      %c0_10 = arith.constant 0 : index
      %c0_11 = arith.constant 0 : index
      %12 = vector.load %arg8[%c0_10, %c0_11] : memref<128x128xf32, #tpu.memory_space<vmem>>, vector<128x128xf32>
      %c0_12 = arith.constant 0 : index
      %c0_13 = arith.constant 0 : index
      %13 = vector.load %arg5[%c0_12, %c0_13] : memref<1x128xf32, #tpu.memory_space<vmem>>, vector<1x128xf32>
      %14 = vector.broadcast %13 : vector<1x128xf32> to vector<128x128xf32>
      %15 = arith.addf %12, %14 : vector<128x128xf32>
      %c0_14 = arith.constant 0 : index
      %c0_15 = arith.constant 0 : index
      %16 = vector.load %arg6[%c0_14, %c0_15] : memref<128x128xf32, #tpu.memory_space<vmem>>, vector<128x128xf32>
      %cst_16 = arith.constant 1.000000e-01 : f32
      %17 = vector.broadcast %cst_16 : f32 to vector<128x128xf32>
      %18 = arith.cmpf olt, %16, %17 : vector<128x128xf32>
      %cst_17 = arith.constant 1.000000e+01 : f32
      %19 = vector.broadcast %cst_17 : f32 to vector<128x128xf32>
      %20 = arith.mulf %15, %19 : vector<128x128xf32>
      %cst_18 = arith.constant 0.000000e+00 : f32
      %21 = vector.broadcast %cst_18 : f32 to vector<128x128xf32>
      %22 = arith.select %18, %20, %21 : vector<128x128xi1>, vector<128x128xf32>
      %c0_19 = arith.constant 0 : index
      %23 = memref.load %arg2[%c0_19] : memref<1xf32, #tpu.memory_space<smem>>
      %cst_20 = arith.constant 0.000000e+00 : f32
      %24 = vector.broadcast %cst_20 : f32 to vector<128x128xf32>
      %25 = arith.cmpf ogt, %22, %24 : vector<128x128xf32>
      %26 = vector.broadcast %23 : f32 to vector<128x128xf32>
      %27 = arith.mulf %26, %22 : vector<128x128xf32>
      %28 = arith.select %25, %22, %27 : vector<128x128xi1>, vector<128x128xf32>
      %c0_21 = arith.constant 0 : index
      %c0_22 = arith.constant 0 : index
      %29 = vector.load %arg7[%c0_21, %c0_22] : memref<128x128xf32, #tpu.memory_space<vmem>>, vector<128x128xf32>
      tpu.vector_store %arg7[%c0_21, %c0_22], %28 {strides = array<i32>} : memref<128x128xf32, #tpu.memory_space<vmem>>, vector<128x128xf32>,
    } else {
    }
    return
  }
  func.func @transform_0(%arg0: i32, %arg1: i32) -> i32 {
    %c0_i32 = arith.constant 0 : i32
    %c0_i32_0 = arith.constant 0 : i32
    return %c0_i32 : i32
  }
  func.func @transform_1(%arg0: i32, %arg1: i32) -> (i32, i32) {
    %c0_i32 = arith.constant 0 : i32
    return %arg0, %arg1 : i32, i32
  }
  func.func @transform_2(%arg0: i32, %arg1: i32) -> (i32, i32) {
    %c0_i32 = arith.constant 0 : i32
    %c0_i32_0 = arith.constant 0 : i32
    return %arg1, %c0_i32 : i32, i32
  }
  func.func @transform_3(%arg0: i32, %arg1: i32) -> (i32, i32) {
    %c0_i32 = arith.constant 0 : i32
    %c0_i32_0 = arith.constant 0 : i32
    %c0_i32_1 = arith.constant 0 : i32
    return %c0_i32, %c0_i32_0 : i32, i32
  }
  func.func @transform_4(%arg0: i32, %arg1: i32) -> (i32, i32) {
    %c0_i32 = arith.constant 0 : i32
    %c0_i32_0 = arith.constant 0 : i32
    return %arg0, %c0_i32 : i32, i32
  }
  func.func @transform_5(%arg0: i32, %arg1: i32) -> (i32, i32) {
    %c0_i32 = arith.constant 0 : i32
    %c0_i32_0 = arith.constant 0 : i32
    return %arg0, %c0_i32 : i32, i32
  }
}

</mosaic_0001>

<llo_original>
// kernel: gcn_forward.2
$region0: #{gcn_forward.2}
  #allocation0 [shape = 'u32[]', space=smem, size = 0x4, offset = 0x4, fixed_abs, tag = 'smem constant byte address 0x4 - core index']
  #allocation1 [shape = 'u32[144,128]{1,0:T(1,128)}', space=vmem, size = 0x12000, scoped, tag = 'internal scratch']
  %s0 = inlined_call_operand.vmem [shape: f32[128,128], index: 0, kind: input, shape index: {}]
  %s1 = inlined_call_operand.vmem [shape: f32[128,128], index: 1, kind: input, shape index: {}]
  %s2 = inlined_call_operand.vmem [shape: f32[1,128], index: 2, kind: input, shape index: {}]
  %s3 = inlined_call_operand.vmem [shape: bf16[128,128], index: 3, kind: output, shape index: {}]
  %s4 = sld [smem:[#allocation0]]
  $region22: #{gcn_forward.2} parent=0
    _
  %s6 = ssub.s32 1, %s4
  %s7 = scalar_select 0, %s6, %s4
  // Predicated region
  $region2: #{gcn_forward.2} parent=0 // pred_check
    _
  $region3: #{gcn_forward.2} parent=0 // pred_check_branch
    %9 = sbr.rel (0) target = $region5
  $region4: #{gcn_forward.2} parent=0 // pred_region
    _
  $region5: #{gcn_forward.2} parent=0 // pred_fallthru
    _
  // Predicated region
  $region6: #{gcn_forward.2} parent=0 // pred_check
    _
  $region7: #{gcn_forward.2} parent=0 // pred_check_branch
    %11 = sbr.rel (0) target = $region9
  $region8: #{gcn_forward.2} parent=0 // pred_region
    _
  $region9: #{gcn_forward.2} parent=0 // pred_fallthru
    _
  // Predicated region
  $region10: #{gcn_forward.2} parent=0 // pred_check
    _
  $region11: #{gcn_forward.2} parent=0 // pred_check_branch
    %13 = sbr.rel (0) target = $region13
  $region12: #{gcn_forward.2} parent=0 // pred_region
    _
  $region13: #{gcn_forward.2} parent=0 // pred_fallthru
    _
  %v14 = vld [vmem:[%s0] sm:$0xff]
  %v15 = vld [vmem:[%s0 + $0x8] sm:$0xff]
  %v16 = vld [vmem:[%s0 + $0x10] sm:$0xff]
  %v17 = vld [vmem:[%s0 + $0x18] sm:$0xff]
  %v18 = vld [vmem:[%s0 + $0x20] sm:$0xff]
  %v19 = vld [vmem:[%s0 + $0x28] sm:$0xff]
  %v20 = vld [vmem:[%s0 + $0x30] sm:$0xff]
  %v21 = vld [vmem:[%s0 + $0x38] sm:$0xff]
  %v22 = vld [vmem:[%s0 + $0x40] sm:$0xff]
  %v23 = vld [vmem:[%s0 + $0x48] sm:$0xff]
  %v24 = vld [vmem:[%s0 + $0x50] sm:$0xff]
  %v25 = vld [vmem:[%s0 + $0x58] sm:$0xff]
  %v26 = vld [vmem:[%s0 + $0x60] sm:$0xff]
  %v27 = vld [vmem:[%s0 + $0x68] sm:$0xff]
  %v28 = vld [vmem:[%s0 + $0x70] sm:$0xff]
  %v29 = vld [vmem:[%s0 + $0x78] sm:$0xff]
  %v30 = vld [vmem:[%s1] sm:$0xff]
  %v31 = vld [vmem:[%s1 + $0x8] sm:$0xff]
  %v32 = vld [vmem:[%s1 + $0x10] sm:$0xff]
  %v33 = vld [vmem:[%s1 + $0x18] sm:$0xff]
  %v34 = vld [vmem:[%s1 + $0x20] sm:$0xff]
  %v35 = vld [vmem:[%s1 + $0x28] sm:$0xff]
  %v36 = vld [vmem:[%s1 + $0x30] sm:$0xff]
  %v37 = vld [vmem:[%s1 + $0x38] sm:$0xff]
  %v38 = vld [vmem:[%s1 + $0x40] sm:$0xff]
  %v39 = vld [vmem:[%s1 + $0x48] sm:$0xff]
  %v40 = vld [vmem:[%s1 + $0x50] sm:$0xff]
  %v41 = vld [vmem:[%s1 + $0x58] sm:$0xff]
  %v42 = vld [vmem:[%s1 + $0x60] sm:$0xff]
  %v43 = vld [vmem:[%s1 + $0x68] sm:$0xff]
  %v44 = vld [vmem:[%s1 + $0x70] sm:$0xff]
  %v45 = vld [vmem:[%s1 + $0x78] sm:$0xff]
  %v46 = vld [vmem:[%s2] sm:$0x1]
  %v48 = vlaneseq
  %v49 = vshrl.u32 %v48, 7
  %v50 = vsub.s32 0, %v49
  %v51 = vrot.slane %v46, %v50
  %53 = vmatprep.subr.mxu0 0.0
  %54 = vmatpush1.msra.mxu0 %v30
  %55 = vmatprep.subr.mxu0 0.0
  %56 = vmatpush1.msra.mxu0 %v31
  %57 = vmatprep.subr.mxu0 0.0
  %58 = vmatpush1.msra.mxu0 %v32
  %59 = vmatprep.subr.mxu0 0.0
  %60 = vmatpush1.msra.mxu0 %v33
  %61 = vmatprep.subr.mxu0 0.0
  %62 = vmatpush1.msra.mxu0 %v34
  %63 = vmatprep.subr.mxu0 0.0
  %64 = vmatpush1.msra.mxu0 %v35
  %65 = vmatprep.subr.mxu0 0.0
  %66 = vmatpush1.msra.mxu0 %v36
  %67 = vmatprep.subr.mxu0 0.0
  %68 = vmatpush1.msra.mxu0 %v37
  %69 = vmatprep.subr.mxu0 0.0
  %70 = vmatpush1.msra.mxu0 %v38
  %71 = vmatprep.subr.mxu0 0.0
  %72 = vmatpush1.msra.mxu0 %v39
  %73 = vmatprep.subr.mxu0 0.0
  %74 = vmatpush1.msra.mxu0 %v40
  %75 = vmatprep.subr.mxu0 0.0
  %76 = vmatpush1.msra.mxu0 %v41
  %77 = vmatprep.subr.mxu0 0.0
  %78 = vmatpush1.msra.mxu0 %v42
  %79 = vmatprep.subr.mxu0 0.0
  %80 = vmatpush1.msra.mxu0 %v43
  %81 = vmatprep.subr.mxu0 0.0
  %82 = vmatpush1.msra.mxu0 %v44
  %83 = vmatprep.subr.mxu0 0.0
  %84 = vmatpush1.msra.mxu0 %v45
  %85 = vmatprep.subr.mxu0 0.0
  %86 = vmatpush1.msra.mxu0 0.0
  %87 = vmatprep.subr.mxu0 0.0
  %88 = vmatpush1.msra.mxu0 0.0
  %89 = vmatprep.subr.mxu0 0.0
  %90 = vmatpush1.msra.mxu0 0.0
  %91 = vmatprep.subr.mxu0 0.0
  %92 = vmatpush1.msra.mxu0 0.0
  %93 = vmatprep.subr.mxu0 0.0
  %94 = vmatpush1.msra.mxu0 0.0
  %95 = vmatprep.subr.mxu0 0.0
  %96 = vmatpush1.msra.mxu0 0.0
  %97 = vmatprep.subr.mxu0 0.0
  %98 = vmatpush1.msra.mxu0 0.0
  %99 = vmatprep.subr.mxu0 0.0
  %100 = vmatpush1.msra.mxu0 0.0
  %101 = vmatprep.subr.mxu0 0.0
  %102 = vmatpush1.msra.mxu0 0.0
  %103 = vmatprep.subr.mxu0 0.0
  %104 = vmatpush1.msra.mxu0 0.0
  %105 = vmatprep.subr.mxu0 0.0
  %106 = vmatpush1.msra.mxu0 0.0
  %107 = vmatprep.subr.mxu0 0.0
  %108 = vmatpush1.msra.mxu0 0.0
  %109 = vmatprep.subr.mxu0 0.0
  %110 = vmatpush1.msra.mxu0 0.0
  %111 = vmatprep.subr.mxu0 0.0
  %112 = vmatpush1.msra.mxu0 0.0
  %113 = vmatprep.subr.mxu0 0.0
  %114 = vmatpush1.msra.mxu0 0.0
  %115 = vmatprep.subr.mxu0 0.0
  %116 = vmatpush1.msra.mxu0 0.0
  %117 = vmatprep.mubr.f32.mxu0 0.0
  %118 = vmatmul.mubr.f32.gmra.mrb[0].mxu0 %v14
  %v119 = vpop.f32.mrb[0].mxu0
  %v120 = vadd.f32 %v51, %v119
  %v121 = vpop.f32.mrb[0].mxu0
  %122 = vmatprep.mubr.f32.mxu0 0.0
  %123 = vmatmul.mubr.f32.gmra.mrb[0].mxu0 %v15
  %v124 = vpop.f32.mrb[0].mxu0
  %v125 = vadd.f32 %v51, %v124
  %v126 = vpop.f32.mrb[0].mxu0
  %127 = vmatprep.mubr.f32.mxu0 0.0
  %128 = vmatmul.mubr.f32.gmra.mrb[0].mxu0 %v16
  %v129 = vpop.f32.mrb[0].mxu0
  %v130 = vadd.f32 %v51, %v129
  %v131 = vpop.f32.mrb[0].mxu0
  %132 = vmatprep.mubr.f32.mxu0 0.0
  %133 = vmatmul.mubr.f32.gmra.mrb[0].mxu0 %v17
  %v134 = vpop.f32.mrb[0].mxu0
  %v135 = vadd.f32 %v51, %v134
  %v136 = vpop.f32.mrb[0].mxu0
  %137 = vmatprep.mubr.f32.mxu0 0.0
  %138 = vmatmul.mubr.f32.gmra.mrb[0].mxu0 %v18
  %v139 = vpop.f32.mrb[0].mxu0
  %v140 = vadd.f32 %v51, %v139
  %v141 = vpop.f32.mrb[0].mxu0
  %142 = vmatprep.mubr.f32.mxu0 0.0
  %143 = vmatmul.mubr.f32.gmra.mrb[0].mxu0 %v19
  %v144 = vpop.f32.mrb[0].mxu0
  %v145 = vadd.f32 %v51, %v144
  %v146 = vpop.f32.mrb[0].mxu0
  %147 = vmatprep.mubr.f32.mxu0 0.0
  %148 = vmatmul.mubr.f32.gmra.mrb[0].mxu0 %v20
  %v149 = vpop.f32.mrb[0].mxu0
  %v150 = vadd.f32 %v51, %v149
  %v151 = vpop.f32.mrb[0].mxu0
  %152 = vmatprep.mubr.f32.mxu0 0.0
  %153 = vmatmul.mubr.f32.gmra.mrb[0].mxu0 %v21
  %v154 = vpop.f32.mrb[0].mxu0
  %v155 = vadd.f32 %v51, %v154
  %v156 = vpop.f32.mrb[0].mxu0
  %157 = vmatprep.mubr.f32.mxu0 0.0
  %158 = vmatmul.mubr.f32.gmra.mrb[0].mxu0 %v22
  %v159 = vpop.f32.mrb[0].mxu0
  %v160 = vadd.f32 %v51, %v159
  %v161 = vpop.f32.mrb[0].mxu0
  %162 = vmatprep.mubr.f32.mxu0 0.0
  %163 = vmatmul.mubr.f32.gmra.mrb[0].mxu0 %v23
  %v164 = vpop.f32.mrb[0].mxu0
  %v165 = vadd.f32 %v51, %v164
  %v166 = vpop.f32.mrb[0].mxu0
  %167 = vmatprep.mubr.f32.mxu0 0.0
  %168 = vmatmul.mubr.f32.gmra.mrb[0].mxu0 %v24
  %v169 = vpop.f32.mrb[0].mxu0
  %v170 = vadd.f32 %v51, %v169
  %v171 = vpop.f32.mrb[0].mxu0
  %172 = vmatprep.mubr.f32.mxu0 0.0
  %173 = vmatmul.mubr.f32.gmra.mrb[0].mxu0 %v25
  %v174 = vpop.f32.mrb[0].mxu0
  %v175 = vadd.f32 %v51, %v174
  %v176 = vpop.f32.mrb[0].mxu0
  %177 = vmatprep.mubr.f32.mxu0 0.0
  %178 = vmatmul.mubr.f32.gmra.mrb[0].mxu0 %v26
  %v179 = vpop.f32.mrb[0].mxu0
  %v180 = vadd.f32 %v51, %v179
  %v181 = vpop.f32.mrb[0].mxu0
  %182 = vmatprep.mubr.f32.mxu0 0.0
  %183 = vmatmul.mubr.f32.gmra.mrb[0].mxu0 %v27
  %v184 = vpop.f32.mrb[0].mxu0
  %v185 = vadd.f32 %v51, %v184
  %v186 = vpop.f32.mrb[0].mxu0
  %187 = vmatprep.mubr.f32.mxu0 0.0
  %188 = vmatmul.mubr.f32.gmra.mrb[0].mxu0 %v28
  %v189 = vpop.f32.mrb[0].mxu0
  %v190 = vadd.f32 %v51, %v189
  %v191 = vpop.f32.mrb[0].mxu0
  %192 = vmatprep.mubr.f32.mxu0 0.0
  %193 = vmatmul.mubr.f32.gmra.mrb[0].mxu0 %v29
  %v194 = vpop.f32.mrb[0].mxu0
  %v195 = vadd.f32 %v51, %v194
  %v196 = vpop.f32.mrb[0].mxu0
  %197 = vdwg.mxu0
  %v198 = vpack.c.bf16 %v125, %v120
  %v199 = vpack.c.bf16 %v135, %v130
  %v200 = vpack.c.bf16 %v145, %v140
  %v201 = vpack.c.bf16 %v155, %v150
  %v202 = vpack.c.bf16 %v165, %v160
  %v203 = vpack.c.bf16 %v175, %v170
  %v204 = vpack.c.bf16 %v185, %v180
  %v205 = vpack.c.bf16 %v195, %v190
  %v214 = vunpack.c.l.b16 %v198
  %v215 = vunpack.c.h.b16 %v198
  %v216 = vunpack.c.l.b16 %v199
  %v217 = vunpack.c.h.b16 %v199
  %v218 = vunpack.c.l.b16 %v200
  %v219 = vunpack.c.h.b16 %v200
  %v220 = vunpack.c.l.b16 %v201
  %v221 = vunpack.c.h.b16 %v201
  %v222 = vunpack.c.l.b16 %v202
  %v223 = vunpack.c.h.b16 %v202
  %v224 = vunpack.c.l.b16 %v203
  %v225 = vunpack.c.h.b16 %v203
  %v226 = vunpack.c.l.b16 %v204
  %v227 = vunpack.c.h.b16 %v204
  %v228 = vunpack.c.l.b16 %v205
  %v229 = vunpack.c.h.b16 %v205
  %v230 = vpack.c.b16 %v214, %v214
  %v231 = vpack.c.b16 %v215, %v215
  %v232 = vpack.c.b16 %v216, %v216
  %v233 = vpack.c.b16 %v217, %v217
  %v234 = vpack.c.b16 %v218, %v218
  %v235 = vpack.c.b16 %v219, %v219
  %v236 = vpack.c.b16 %v220, %v220
  %v237 = vpack.c.b16 %v221, %v221
  %v238 = vpack.c.b16 %v222, %v222
  %v239 = vpack.c.b16 %v223, %v223
  %v240 = vpack.c.b16 %v224, %v224
  %v241 = vpack.c.b16 %v225, %v225
  %v242 = vpack.c.b16 %v226, %v226
  %v243 = vpack.c.b16 %v227, %v227
  %v244 = vpack.c.b16 %v228, %v228
  %v245 = vpack.c.b16 %v229, %v229
  %262 = vst [vmem:[%s3] sm:$0xf] %v230
  %263 = vst [vmem:[%s3 + $0x4] sm:$0xf] %v231
  %264 = vst [vmem:[%s3 + $0x8] sm:$0xf] %v232
  %265 = vst [vmem:[%s3 + $0xc] sm:$0xf] %v233
  %266 = vst [vmem:[%s3 + $0x10] sm:$0xf] %v234
  %267 = vst [vmem:[%s3 + $0x14] sm:$0xf] %v235
  %268 = vst [vmem:[%s3 + $0x18] sm:$0xf] %v236
  %269 = vst [vmem:[%s3 + $0x1c] sm:$0xf] %v237
  %270 = vst [vmem:[%s3 + $0x20] sm:$0xf] %v238
  %271 = vst [vmem:[%s3 + $0x24] sm:$0xf] %v239
  %272 = vst [vmem:[%s3 + $0x28] sm:$0xf] %v240
  %273 = vst [vmem:[%s3 + $0x2c] sm:$0xf] %v241
  %274 = vst [vmem:[%s3 + $0x30] sm:$0xf] %v242
  %275 = vst [vmem:[%s3 + $0x34] sm:$0xf] %v243
  %276 = vst [vmem:[%s3 + $0x38] sm:$0xf] %v244
  %277 = vst [vmem:[%s3 + $0x3c] sm:$0xf] %v245
  // Predicated region
  $region14: #{gcn_forward.2} parent=0 // pred_check
    _
  $region15: #{gcn_forward.2} parent=0 // pred_check_branch
    %279 = sbr.rel (0) target = $region17
  $region16: #{gcn_forward.2} parent=0 // pred_region
    _
  $region17: #{gcn_forward.2} parent=0 // pred_fallthru
    _
  // Predicated region
  $region18: #{gcn_forward.2} parent=0 // pred_check
    _
  $region19: #{gcn_forward.2} parent=0 // pred_check_branch
    %281 = sbr.rel (0) target = $region21
  $region20: #{gcn_forward.2} parent=0 // pred_region
    _
  $region21: #{gcn_forward.2} parent=0 // pred_fallthru
    _

// kernel: gcn_forward.3
$region0: #{gcn_forward.3}
  #allocation0 [shape = 'u32[]', space=smem, size = 0x4, offset = 0x4, fixed_abs, tag = 'smem constant byte address 0x4 - core index']
  #allocation1 [shape = 'u32[144,128]{1,0:T(1,128)}', space=vmem, size = 0x12000, scoped, tag = 'internal scratch']
  #allocation2 [shape = 'f32[128,128]{1,0:T(8,128)}', space=vmem, size = 0x10000, scoped, tag = 'scratch operand']
  #allocation3 [shape = 'f32[1]{0:T(128)S(6)}', space=smem, size = 0x200, scoped, tag = 'scoped memory for gcn_forward.3']
  %s0 = inlined_call_operand.<no memory space> [shape: f32[1], index: 0, kind: input, shape index: {}]
  %s1 = inlined_call_operand.vmem [shape: bf16[128,128], index: 1, kind: input, shape index: {}]
  %s2 = inlined_call_operand.vmem [shape: bf16[128,128], index: 2, kind: input, shape index: {}]
  %s3 = inlined_call_operand.vmem [shape: f32[1,128], index: 3, kind: input, shape index: {}]
  %s4 = inlined_call_operand.vmem [shape: f32[128,128], index: 4, kind: input, shape index: {}]
  %s5 = inlined_call_operand.vmem [shape: f32[128,128], index: 5, kind: output, shape index: {}]
  %s6 = sld [smem:[#allocation0]]
  $region38: #{gcn_forward.3} parent=0
    _
  %s8 = ssub.s32 1, %s6
  %s9 = scalar_select 0, %s8, %s6
  %10 = sst [smem:[#allocation3]] %s0
  // Predicated region
  $region2: #{gcn_forward.3} parent=0 // pred_check
    _
  $region3: #{gcn_forward.3} parent=0 // pred_check_branch
    %12 = sbr.rel (0) target = $region5
  $region4: #{gcn_forward.3} parent=0 // pred_region
    _
  $region5: #{gcn_forward.3} parent=0 // pred_fallthru
    _
  // Predicated region
  $region6: #{gcn_forward.3} parent=0 // pred_check
    _
  $region7: #{gcn_forward.3} parent=0 // pred_check_branch
    %14 = sbr.rel (0) target = $region9
  $region8: #{gcn_forward.3} parent=0 // pred_region
    _
  $region9: #{gcn_forward.3} parent=0 // pred_fallthru
    _
  // Predicated region
  $region10: #{gcn_forward.3} parent=0 // pred_check
    _
  $region11: #{gcn_forward.3} parent=0 // pred_check_branch
    %16 = sbr.rel (0) target = $region13
  $region12: #{gcn_forward.3} parent=0 // pred_region
    _
  $region13: #{gcn_forward.3} parent=0 // pred_fallthru
    _
  // Predicated region
  $region14: #{gcn_forward.3} parent=0 // pred_check
    _
  $region15: #{gcn_forward.3} parent=0 // pred_check_branch
    %18 = sbr.rel (0) target = $region17
  $region16: #{gcn_forward.3} parent=0 // pred_region
    _
  $region17: #{gcn_forward.3} parent=0 // pred_fallthru
    _
  // Predicated region
  $region18: #{gcn_forward.3} parent=0 // pred_check
    _
  $region19: #{gcn_forward.3} parent=0 // pred_check_branch
    %20 = sbr.rel (0) target = $region21
  $region20: #{gcn_forward.3} parent=0 // pred_region
    _
  $region21: #{gcn_forward.3} parent=0 // pred_fallthru
    _
  %p22 = scmp.eq.s32.totalorder 0, 0
  // Predicated region
  $region22: #{gcn_forward.3} parent=0 // pred_check
    %p23 = pneg %p22
  $region23: #{gcn_forward.3} parent=0 // pred_check_branch
    %25 = sbr.rel (%p23) target = $region25
  $region24: #{gcn_forward.3} parent=0 // pred_region
    %26 = vst [vmem:[#allocation2] sm:$0xff] 0.0
    %27 = vst [vmem:[#allocation2 + $0x8] sm:$0xff] 0.0
    %28 = vst [vmem:[#allocation2 + $0x10] sm:$0xff] 0.0
    %29 = vst [vmem:[#allocation2 + $0x18] sm:$0xff] 0.0
    %30 = vst [vmem:[#allocation2 + $0x20] sm:$0xff] 0.0
    %31 = vst [vmem:[#allocation2 + $0x28] sm:$0xff] 0.0
    %32 = vst [vmem:[#allocation2 + $0x30] sm:$0xff] 0.0
    %33 = vst [vmem:[#allocation2 + $0x38] sm:$0xff] 0.0
    %34 = vst [vmem:[#allocation2 + $0x40] sm:$0xff] 0.0
    %35 = vst [vmem:[#allocation2 + $0x48] sm:$0xff] 0.0
    %36 = vst [vmem:[#allocation2 + $0x50] sm:$0xff] 0.0
    %37 = vst [vmem:[#allocation2 + $0x58] sm:$0xff] 0.0
    %38 = vst [vmem:[#allocation2 + $0x60] sm:$0xff] 0.0
    %39 = vst [vmem:[#allocation2 + $0x68] sm:$0xff] 0.0
    %40 = vst [vmem:[#allocation2 + $0x70] sm:$0xff] 0.0
    %41 = vst [vmem:[#allocation2 + $0x78] sm:$0xff] 0.0
  $region25: #{gcn_forward.3} parent=0 // pred_fallthru
    _
  %v42 = vld [vmem:[#allocation2] sm:$0xff]
  %v43 = vld [vmem:[#allocation2 + $0x8] sm:$0xff]
  %v44 = vld [vmem:[#allocation2 + $0x10] sm:$0xff]
  %v45 = vld [vmem:[#allocation2 + $0x18] sm:$0xff]
  %v46 = vld [vmem:[#allocation2 + $0x20] sm:$0xff]
  %v47 = vld [vmem:[#allocation2 + $0x28] sm:$0xff]
  %v48 = vld [vmem:[#allocation2 + $0x30] sm:$0xff]
  %v49 = vld [vmem:[#allocation2 + $0x38] sm:$0xff]
  %v50 = vld [vmem:[#allocation2 + $0x40] sm:$0xff]
  %v51 = vld [vmem:[#allocation2 + $0x48] sm:$0xff]
  %v52 = vld [vmem:[#allocation2 + $0x50] sm:$0xff]
  %v53 = vld [vmem:[#allocation2 + $0x58] sm:$0xff]
  %v54 = vld [vmem:[#allocation2 + $0x60] sm:$0xff]
  %v55 = vld [vmem:[#allocation2 + $0x68] sm:$0xff]
  %v56 = vld [vmem:[#allocation2 + $0x70] sm:$0xff]
  %v57 = vld [vmem:[#allocation2 + $0x78] sm:$0xff]
  %v58 = vld [vmem:[%s1] sm:$0xf]
  %v59 = vld [vmem:[%s1 + $0x4] sm:$0xf]
  %v60 = vld [vmem:[%s1 + $0x8] sm:$0xf]
  %v61 = vld [vmem:[%s1 + $0xc] sm:$0xf]
  %v62 = vld [vmem:[%s1 + $0x10] sm:$0xf]
  %v63 = vld [vmem:[%s1 + $0x14] sm:$0xf]
  %v64 = vld [vmem:[%s1 + $0x18] sm:$0xf]
  %v65 = vld [vmem:[%s1 + $0x1c] sm:$0xf]
  %v66 = vld [vmem:[%s1 + $0x20] sm:$0xf]
  %v67 = vld [vmem:[%s1 + $0x24] sm:$0xf]
  %v68 = vld [vmem:[%s1 + $0x28] sm:$0xf]
  %v69 = vld [vmem:[%s1 + $0x2c] sm:$0xf]
  %v70 = vld [vmem:[%s1 + $0x30] sm:$0xf]
  %v71 = vld [vmem:[%s1 + $0x34] sm:$0xf]
  %v72 = vld [vmem:[%s1 + $0x38] sm:$0xf]
  %v73 = vld [vmem:[%s1 + $0x3c] sm:$0xf]
  %v74 = vld [vmem:[%s2] sm:$0xf]
  %v75 = vld [vmem:[%s2 + $0x4] sm:$0xf]
  %v76 = vld [vmem:[%s2 + $0x8] sm:$0xf]
  %v77 = vld [vmem:[%s2 + $0xc] sm:$0xf]
  %v78 = vld [vmem:[%s2 + $0x10] sm:$0xf]
  %v79 = vld [vmem:[%s2 + $0x14] sm:$0xf]
  %v80 = vld [vmem:[%s2 + $0x18] sm:$0xf]
  %v81 = vld [vmem:[%s2 + $0x1c] sm:$0xf]
  %v82 = vld [vmem:[%s2 + $0x20] sm:$0xf]
  %v83 = vld [vmem:[%s2 + $0x24] sm:$0xf]
  %v84 = vld [vmem:[%s2 + $0x28] sm:$0xf]
  %v85 = vld [vmem:[%s2 + $0x2c] sm:$0xf]
  %v86 = vld [vmem:[%s2 + $0x30] sm:$0xf]
  %v87 = vld [vmem:[%s2 + $0x34] sm:$0xf]
  %v88 = vld [vmem:[%s2 + $0x38] sm:$0xf]
  %v89 = vld [vmem:[%s2 + $0x3c] sm:$0xf]
  %v106 = vunpack.c.l.b16 %v58
  %v107 = vunpack.c.l.b16 %v59
  %v108 = vunpack.c.l.b16 %v60
  %v109 = vunpack.c.l.b16 %v61
  %v110 = vunpack.c.l.b16 %v62
  %v111 = vunpack.c.l.b16 %v63
  %v112 = vunpack.c.l.b16 %v64
  %v113 = vunpack.c.l.b16 %v65
  %v114 = vunpack.c.l.b16 %v66
  %v115 = vunpack.c.l.b16 %v67
  %v116 = vunpack.c.l.b16 %v68
  %v117 = vunpack.c.l.b16 %v69
  %v118 = vunpack.c.l.b16 %v70
  %v119 = vunpack.c.l.b16 %v71
  %v120 = vunpack.c.l.b16 %v72
  %v121 = vunpack.c.l.b16 %v73
  %v122 = vpack.c.b16 %v107, %v106
  %v123 = vpack.c.b16 %v109, %v108
  %v124 = vpack.c.b16 %v111, %v110
  %v125 = vpack.c.b16 %v113, %v112
  %v126 = vpack.c.b16 %v115, %v114
  %v127 = vpack.c.b16 %v117, %v116
  %v128 = vpack.c.b16 %v119, %v118
  %v129 = vpack.c.b16 %v121, %v120
  %v154 = vunpack.c.l.b16 %v74
  %v155 = vunpack.c.l.b16 %v75
  %v156 = vunpack.c.l.b16 %v76
  %v157 = vunpack.c.l.b16 %v77
  %v158 = vunpack.c.l.b16 %v78
  %v159 = vunpack.c.l.b16 %v79
  %v160 = vunpack.c.l.b16 %v80
  %v161 = vunpack.c.l.b16 %v81
  %v162 = vunpack.c.l.b16 %v82
  %v163 = vunpack.c.l.b16 %v83
  %v164 = vunpack.c.l.b16 %v84
  %v165 = vunpack.c.l.b16 %v85
  %v166 = vunpack.c.l.b16 %v86
  %v167 = vunpack.c.l.b16 %v87
  %v168 = vunpack.c.l.b16 %v88
  %v169 = vunpack.c.l.b16 %v89
  %v170 = vpack.c.b16 %v155, %v154
  %v171 = vpack.c.b16 %v157, %v156
  %v172 = vpack.c.b16 %v159, %v158
  %v173 = vpack.c.b16 %v161, %v160
  %v174 = vpack.c.b16 %v163, %v162
  %v175 = vpack.c.b16 %v165, %v164
  %v176 = vpack.c.b16 %v167, %v166
  %v177 = vpack.c.b16 %v169, %v168
  %186 = vmatprep.subr.bf16.mxu0 0
  %187 = vmatpush1.bf16.msra.mxu0 %v170
  %188 = vmatprep.subr.bf16.mxu0 0
  %189 = vmatpush1.bf16.msra.mxu0 %v171
  %190 = vmatprep.subr.bf16.mxu0 0
  %191 = vmatpush1.bf16.msra.mxu0 %v172
  %192 = vmatprep.subr.bf16.mxu0 0
  %193 = vmatpush1.bf16.msra.mxu0 %v173
  %194 = vmatprep.subr.bf16.mxu0 0
  %195 = vmatpush1.bf16.msra.mxu0 %v174
  %196 = vmatprep.subr.bf16.mxu0 0
  %197 = vmatpush1.bf16.msra.mxu0 %v175
  %198 = vmatprep.subr.bf16.mxu0 0
  %199 = vmatpush1.bf16.msra.mxu0 %v176
  %200 = vmatprep.subr.bf16.mxu0 0
  %201 = vmatpush1.bf16.msra.mxu0 %v177
  %202 = vmatprep.subr.bf16.mxu0 0
  %203 = vmatpush1.bf16.msra.mxu0 0
  %204 = vmatprep.subr.bf16.mxu0 0
  %205 = vmatpush1.bf16.msra.mxu0 0
  %206 = vmatprep.subr.bf16.mxu0 0
  %207 = vmatpush1.bf16.msra.mxu0 0
  %208 = vmatprep.subr.bf16.mxu0 0
  %209 = vmatpush1.bf16.msra.mxu0 0
  %210 = vmatprep.subr.bf16.mxu0 0
  %211 = vmatpush1.bf16.msra.mxu0 0
  %212 = vmatprep.subr.bf16.mxu0 0
  %213 = vmatpush1.bf16.msra.mxu0 0
  %214 = vmatprep.subr.bf16.mxu0 0
  %215 = vmatpush1.bf16.msra.mxu0 0
  %216 = vmatprep.subr.bf16.mxu0 0
  %217 = vmatpush1.bf16.msra.mxu0 0
  %218 = vmatprep.mubr.bf16.mxu0 0
  %219 = vmatmul.mubr.bf16.gmra.mrb[0].mxu0 %v122
  %v220 = vpop.f32.mrb[0].mxu0
  %v221 = vadd.f32 0.0, %v220
  %v222 = vpop.f32.mrb[0].mxu0
  %v223 = vpop.f32.mrb[0].mxu0
  %v224 = vadd.f32 0.0, %v223
  %v225 = vpop.f32.mrb[0].mxu0
  %226 = vmatprep.mubr.bf16.mxu0 0
  %227 = vmatmul.mubr.bf16.gmra.mrb[0].mxu0 %v123
  %v228 = vpop.f32.mrb[0].mxu0
  %v229 = vadd.f32 0.0, %v228
  %v230 = vpop.f32.mrb[0].mxu0
  %v231 = vpop.f32.mrb[0].mxu0
  %v232 = vadd.f32 0.0, %v231
  %v233 = vpop.f32.mrb[0].mxu0
  %234 = vmatprep.mubr.bf16.mxu0 0
  %235 = vmatmul.mubr.bf16.gmra.mrb[0].mxu0 %v124
  %v236 = vpop.f32.mrb[0].mxu0
  %v237 = vadd.f32 0.0, %v236
  %v238 = vpop.f32.mrb[0].mxu0
  %v239 = vpop.f32.mrb[0].mxu0
  %v240 = vadd.f32 0.0, %v239
  %v241 = vpop.f32.mrb[0].mxu0
  %242 = vmatprep.mubr.bf16.mxu0 0
  %243 = vmatmul.mubr.bf16.gmra.mrb[0].mxu0 %v125
  %v244 = vpop.f32.mrb[0].mxu0
  %v245 = vadd.f32 0.0, %v244
  %v246 = vpop.f32.mrb[0].mxu0
  %v247 = vpop.f32.mrb[0].mxu0
  %v248 = vadd.f32 0.0, %v247
  %v249 = vpop.f32.mrb[0].mxu0
  %250 = vmatprep.mubr.bf16.mxu0 0
  %251 = vmatmul.mubr.bf16.gmra.mrb[0].mxu0 %v126
  %v252 = vpop.f32.mrb[0].mxu0
  %v253 = vadd.f32 0.0, %v252
  %v254 = vpop.f32.mrb[0].mxu0
  %v255 = vpop.f32.mrb[0].mxu0
  %v256 = vadd.f32 0.0, %v255
  %v257 = vpop.f32.mrb[0].mxu0
  %258 = vmatprep.mubr.bf16.mxu0 0
  %259 = vmatmul.mubr.bf16.gmra.mrb[0].mxu0 %v127
  %v260 = vpop.f32.mrb[0].mxu0
  %v261 = vadd.f32 0.0, %v260
  %v262 = vpop.f32.mrb[0].mxu0
  %v263 = vpop.f32.mrb[0].mxu0
  %v264 = vadd.f32 0.0, %v263
  %v265 = vpop.f32.mrb[0].mxu0
  %266 = vmatprep.mubr.bf16.mxu0 0
  %267 = vmatmul.mubr.bf16.gmra.mrb[0].mxu0 %v128
  %v268 = vpop.f32.mrb[0].mxu0
  %v269 = vadd.f32 0.0, %v268
  %v270 = vpop.f32.mrb[0].mxu0
  %v271 = vpop.f32.mrb[0].mxu0
  %v272 = vadd.f32 0.0, %v271
  %v273 = vpop.f32.mrb[0].mxu0
  %274 = vmatprep.mubr.bf16.mxu0 0
  %275 = vmatmul.mubr.bf16.gmra.mrb[0].mxu0 %v129
  %v276 = vpop.f32.mrb[0].mxu0
  %v277 = vadd.f32 0.0, %v276
  %v278 = vpop.f32.mrb[0].mxu0
  %v279 = vpop.f32.mrb[0].mxu0
  %v280 = vadd.f32 0.0, %v279
  %v281 = vpop.f32.mrb[0].mxu0
  %282 = vdwg.mxu0
  %v283 = vadd.f32 %v42, %v221
  %v284 = vadd.f32 %v43, %v224
  %v285 = vadd.f32 %v44, %v229
  %v286 = vadd.f32 %v45, %v232
  %v287 = vadd.f32 %v46, %v237
  %v288 = vadd.f32 %v47, %v240
  %v289 = vadd.f32 %v48, %v245
  %v290 = vadd.f32 %v49, %v248
  %v291 = vadd.f32 %v50, %v253
  %v292 = vadd.f32 %v51, %v256
  %v293 = vadd.f32 %v52, %v261
  %v294 = vadd.f32 %v53, %v264
  %v295 = vadd.f32 %v54, %v269
  %v296 = vadd.f32 %v55, %v272
  %v297 = vadd.f32 %v56, %v277
  %v298 = vadd.f32 %v57, %v280
  %299 = vst [vmem:[#allocation2] sm:$0xff] %v283
  %300 = vst [vmem:[#allocation2 + $0x8] sm:$0xff] %v284
  %301 = vst [vmem:[#allocation2 + $0x10] sm:$0xff] %v285
  %302 = vst [vmem:[#allocation2 + $0x18] sm:$0xff] %v286
  %303 = vst [vmem:[#allocation2 + $0x20] sm:$0xff] %v287
  %304 = vst [vmem:[#allocation2 + $0x28] sm:$0xff] %v288
  %305 = vst [vmem:[#allocation2 + $0x30] sm:$0xff] %v289
  %306 = vst [vmem:[#allocation2 + $0x38] sm:$0xff] %v290
  %307 = vst [vmem:[#allocation2 + $0x40] sm:$0xff] %v291
  %308 = vst [vmem:[#allocation2 + $0x48] sm:$0xff] %v292
  %309 = vst [vmem:[#allocation2 + $0x50] sm:$0xff] %v293
  %310 = vst [vmem:[#allocation2 + $0x58] sm:$0xff] %v294
  %311 = vst [vmem:[#allocation2 + $0x60] sm:$0xff] %v295
  %312 = vst [vmem:[#allocation2 + $0x68] sm:$0xff] %v296
  %313 = vst [vmem:[#allocation2 + $0x70] sm:$0xff] %v297
  %314 = vst [vmem:[#allocation2 + $0x78] sm:$0xff] %v298
  // Predicated region
  $region26: #{gcn_forward.3} parent=0 // pred_check
    %p315 = pneg %p22
  $region27: #{gcn_forward.3} parent=0 // pred_check_branch
    %317 = sbr.rel (%p315) target = $region29
  $region28: #{gcn_forward.3} parent=0 // pred_region
    %v318 = vld [vmem:[#allocation2] sm:$0xff]
    %v319 = vld [vmem:[#allocation2 + $0x8] sm:$0xff]
    %v320 = vld [vmem:[#allocation2 + $0x10] sm:$0xff]
    %v321 = vld [vmem:[#allocation2 + $0x18] sm:$0xff]
    %v322 = vld [vmem:[#allocation2 + $0x20] sm:$0xff]
    %v323 = vld [vmem:[#allocation2 + $0x28] sm:$0xff]
    %v324 = vld [vmem:[#allocation2 + $0x30] sm:$0xff]
    %v325 = vld [vmem:[#allocation2 + $0x38] sm:$0xff]
    %v326 = vld [vmem:[#allocation2 + $0x40] sm:$0xff]
    %v327 = vld [vmem:[#allocation2 + $0x48] sm:$0xff]
    %v328 = vld [vmem:[#allocation2 + $0x50] sm:$0xff]
    %v329 = vld [vmem:[#allocation2 + $0x58] sm:$0xff]
    %v330 = vld [vmem:[#allocation2 + $0x60] sm:$0xff]
    %v331 = vld [vmem:[#allocation2 + $0x68] sm:$0xff]
    %v332 = vld [vmem:[#allocation2 + $0x70] sm:$0xff]
    %v333 = vld [vmem:[#allocation2 + $0x78] sm:$0xff]
    %v334 = vld [vmem:[%s3] sm:$0x1]
    %v336 = vlaneseq
    %v337 = vshrl.u32 %v336, 7
    %v338 = vsub.s32 0, %v337
    %v339 = vrot.slane %v334, %v338
    %v341 = vadd.f32 %v318, %v339
    %v342 = vadd.f32 %v319, %v339
    %v343 = vadd.f32 %v320, %v339
    %v344 = vadd.f32 %v321, %v339
    %v345 = vadd.f32 %v322, %v339
    %v346 = vadd.f32 %v323, %v339
    %v347 = vadd.f32 %v324, %v339
    %v348 = vadd.f32 %v325, %v339
    %v349 = vadd.f32 %v326, %v339
    %v350 = vadd.f32 %v327, %v339
    %v351 = vadd.f32 %v328, %v339
    %v352 = vadd.f32 %v329, %v339
    %v353 = vadd.f32 %v330, %v339
    %v354 = vadd.f32 %v331, %v339
    %v355 = vadd.f32 %v332, %v339
    %v356 = vadd.f32 %v333, %v339
    %v357 = vld [vmem:[%s4] sm:$0xff]
    %v358 = vld [vmem:[%s4 + $0x8] sm:$0xff]
    %v359 = vld [vmem:[%s4 + $0x10] sm:$0xff]
    %v360 = vld [vmem:[%s4 + $0x18] sm:$0xff]
    %v361 = vld [vmem:[%s4 + $0x20] sm:$0xff]
    %v362 = vld [vmem:[%s4 + $0x28] sm:$0xff]
    %v363 = vld [vmem:[%s4 + $0x30] sm:$0xff]
    %v364 = vld [vmem:[%s4 + $0x38] sm:$0xff]
    %v365 = vld [vmem:[%s4 + $0x40] sm:$0xff]
    %v366 = vld [vmem:[%s4 + $0x48] sm:$0xff]
    %v367 = vld [vmem:[%s4 + $0x50] sm:$0xff]
    %v368 = vld [vmem:[%s4 + $0x58] sm:$0xff]
    %v369 = vld [vmem:[%s4 + $0x60] sm:$0xff]
    %v370 = vld [vmem:[%s4 + $0x68] sm:$0xff]
    %v371 = vld [vmem:[%s4 + $0x70] sm:$0xff]
    %v372 = vld [vmem:[%s4 + $0x78] sm:$0xff]
    %vm373 = vcmp.lt.f32.partialorder %v357, 0.1
    %vm374 = vcmp.lt.f32.partialorder %v358, 0.1
    %vm375 = vcmp.lt.f32.partialorder %v359, 0.1
    %vm376 = vcmp.lt.f32.partialorder %v360, 0.1
    %vm377 = vcmp.lt.f32.partialorder %v361, 0.1
    %vm378 = vcmp.lt.f32.partialorder %v362, 0.1
    %vm379 = vcmp.lt.f32.partialorder %v363, 0.1
    %vm380 = vcmp.lt.f32.partialorder %v364, 0.1
    %vm381 = vcmp.lt.f32.partialorder %v365, 0.1
    %vm382 = vcmp.lt.f32.partialorder %v366, 0.1
    %vm383 = vcmp.lt.f32.partialorder %v367, 0.1
    %vm384 = vcmp.lt.f32.partialorder %v368, 0.1
    %vm385 = vcmp.lt.f32.partialorder %v369, 0.1
    %vm386 = vcmp.lt.f32.partialorder %v370, 0.1
    %vm387 = vcmp.lt.f32.partialorder %v371, 0.1
    %vm388 = vcmp.lt.f32.partialorder %v372, 0.1
    %v389 = vmul.f32 %v341, 10.0
    %v390 = vmul.f32 %v342, 10.0
    %v391 = vmul.f32 %v343, 10.0
    %v392 = vmul.f32 %v344, 10.0
    %v393 = vmul.f32 %v345, 10.0
    %v394 = vmul.f32 %v346, 10.0
    %v395 = vmul.f32 %v347, 10.0
    %v396 = vmul.f32 %v348, 10.0
    %v397 = vmul.f32 %v349, 10.0
    %v398 = vmul.f32 %v350, 10.0
    %v399 = vmul.f32 %v351, 10.0
    %v400 = vmul.f32 %v352, 10.0
    %v401 = vmul.f32 %v353, 10.0
    %v402 = vmul.f32 %v354, 10.0
    %v403 = vmul.f32 %v355, 10.0
    %v404 = vmul.f32 %v356, 10.0
    %v405 = vsel %vm373, %v389, 0.0
    %v406 = vsel %vm374, %v390, 0.0
    %v407 = vsel %vm375, %v391, 0.0
    %v408 = vsel %vm376, %v392, 0.0
    %v409 = vsel %vm377, %v393, 0.0
    %v410 = vsel %vm378, %v394, 0.0
    %v411 = vsel %vm379, %v395, 0.0
    %v412 = vsel %vm380, %v396, 0.0
    %v413 = vsel %vm381, %v397, 0.0
    %v414 = vsel %vm382, %v398, 0.0
    %v415 = vsel %vm383, %v399, 0.0
    %v416 = vsel %vm384, %v400, 0.0
    %v417 = vsel %vm385, %v401, 0.0
    %v418 = vsel %vm386, %v402, 0.0
    %v419 = vsel %vm387, %v403, 0.0
    %v420 = vsel %vm388, %v404, 0.0
    %s421 = sld [smem:[#allocation3]]
    %vm422 = vcmp.gt.f32.partialorder %v405, 0.0
    %vm423 = vcmp.gt.f32.partialorder %v406, 0.0
    %vm424 = vcmp.gt.f32.partialorder %v407, 0.0
    %vm425 = vcmp.gt.f32.partialorder %v408, 0.0
    %vm426 = vcmp.gt.f32.partialorder %v409, 0.0
    %vm427 = vcmp.gt.f32.partialorder %v410, 0.0
    %vm428 = vcmp.gt.f32.partialorder %v411, 0.0
    %vm429 = vcmp.gt.f32.partialorder %v412, 0.0
    %vm430 = vcmp.gt.f32.partialorder %v413, 0.0
    %vm431 = vcmp.gt.f32.partialorder %v414, 0.0
    %vm432 = vcmp.gt.f32.partialorder %v415, 0.0
    %vm433 = vcmp.gt.f32.partialorder %v416, 0.0
    %vm434 = vcmp.gt.f32.partialorder %v417, 0.0
    %vm435 = vcmp.gt.f32.partialorder %v418, 0.0
    %vm436 = vcmp.gt.f32.partialorder %v419, 0.0
    %vm437 = vcmp.gt.f32.partialorder %v420, 0.0
    %v438 = vstv %s421
    %v439 = vmul.f32 %v438, %v405
    %v440 = vmul.f32 %v438, %v406
    %v441 = vmul.f32 %v438, %v407
    %v442 = vmul.f32 %v438, %v408
    %v443 = vmul.f32 %v438, %v409
    %v444 = vmul.f32 %v438, %v410
    %v445 = vmul.f32 %v438, %v411
    %v446 = vmul.f32 %v438, %v412
    %v447 = vmul.f32 %v438, %v413
    %v448 = vmul.f32 %v438, %v414
    %v449 = vmul.f32 %v438, %v415
    %v450 = vmul.f32 %v438, %v416
    %v451 = vmul.f32 %v438, %v417
    %v452 = vmul.f32 %v438, %v418
    %v453 = vmul.f32 %v438, %v419
    %v454 = vmul.f32 %v438, %v420
    %v455 = vsel %vm422, %v405, %v439
    %v456 = vsel %vm423, %v406, %v440
    %v457 = vsel %vm424, %v407, %v441
    %v458 = vsel %vm425, %v408, %v442
    %v459 = vsel %vm426, %v409, %v443
    %v460 = vsel %vm427, %v410, %v444
    %v461 = vsel %vm428, %v411, %v445
    %v462 = vsel %vm429, %v412, %v446
    %v463 = vsel %vm430, %v413, %v447
    %v464 = vsel %vm431, %v414, %v448
    %v465 = vsel %vm432, %v415, %v449
    %v466 = vsel %vm433, %v416, %v450
    %v467 = vsel %vm434, %v417, %v451
    %v468 = vsel %vm435, %v418, %v452
    %v469 = vsel %vm436, %v419, %v453
    %v470 = vsel %vm437, %v420, %v454
    %471 = vst [vmem:[%s5] sm:$0xff] %v455
    %472 = vst [vmem:[%s5 + $0x8] sm:$0xff] %v456
    %473 = vst [vmem:[%s5 + $0x10] sm:$0xff] %v457
    %474 = vst [vmem:[%s5 + $0x18] sm:$0xff] %v458
    %475 = vst [vmem:[%s5 + $0x20] sm:$0xff] %v459
    %476 = vst [vmem:[%s5 + $0x28] sm:$0xff] %v460
    %477 = vst [vmem:[%s5 + $0x30] sm:$0xff] %v461
    %478 = vst [vmem:[%s5 + $0x38] sm:$0xff] %v462
    %479 = vst [vmem:[%s5 + $0x40] sm:$0xff] %v463
    %480 = vst [vmem:[%s5 + $0x48] sm:$0xff] %v464
    %481 = vst [vmem:[%s5 + $0x50] sm:$0xff] %v465
    %482 = vst [vmem:[%s5 + $0x58] sm:$0xff] %v466
    %483 = vst [vmem:[%s5 + $0x60] sm:$0xff] %v467
    %484 = vst [vmem:[%s5 + $0x68] sm:$0xff] %v468
    %485 = vst [vmem:[%s5 + $0x70] sm:$0xff] %v469
    %486 = vst [vmem:[%s5 + $0x78] sm:$0xff] %v470
  $region29: #{gcn_forward.3} parent=0 // pred_fallthru
    _
  // Predicated region
  $region30: #{gcn_forward.3} parent=0 // pred_check
    _
  $region31: #{gcn_forward.3} parent=0 // pred_check_branch
    %488 = sbr.rel (0) target = $region33
  $region32: #{gcn_forward.3} parent=0 // pred_region
    _
  $region33: #{gcn_forward.3} parent=0 // pred_fallthru
    _
  // Predicated region
  $region34: #{gcn_forward.3} parent=0 // pred_check
    _
  $region35: #{gcn_forward.3} parent=0 // pred_check_branch
    %490 = sbr.rel (0) target = $region37
  $region36: #{gcn_forward.3} parent=0 // pred_region
    _
  $region37: #{gcn_forward.3} parent=0 // pred_fallthru
    _

</llo_original>
